<compile_context>
chip_gen: v7x
topology: tpu7x:2x2x1
jax: 0.10.0
libtpu: 0.0.40
codegen_flags: <defaults>
</compile_context>

<pallas_src>
import functools

import jax
import jax.numpy as jnp
from jax.experimental import pallas as pl
from jax.experimental.pallas import tpu as pltpu


def _round_up(v, m):
    return (v + m - 1) // m * m


# ----------------------------- Pallas matmul -----------------------------

def _matmul_kernel(a_ref, b_ref, o_ref):
    # Output block index_map is constant over k -> o_ref is resident across the
    # reduction axis; accumulate directly into it (no scratch accumulator).
    @pl.when(pl.program_id(2) == 0)
    def _():
        o_ref[...] = jnp.zeros_like(o_ref)

    o_ref[...] += jnp.dot(a_ref[...], b_ref[...],
                          preferred_element_type=jnp.float32)


def pallas_matmul(a, b, *, use_bf16=True):
    """C = A @ B, A:[M,K] B:[K,N] -> [M,N] float32 (bf16 operands, f32 acc)."""
    M, K = a.shape
    K2, N = b.shape
    assert K == K2
    in_dt = jnp.bfloat16 if use_bf16 else jnp.float32
    sub = 16 if use_bf16 else 8            # sublane minimum for operand dtype

    TM = min(256, _round_up(M, sub))
    TN = min(256, _round_up(N, 128))
    Kp = _round_up(K, 128)
    TK = 512 if Kp % 512 == 0 else (256 if Kp % 256 == 0 else 128)
    TK = min(TK, Kp)
    Mp, Np = _round_up(M, TM), _round_up(N, TN)

    a = a.astype(in_dt)
    b = b.astype(in_dt)
    if (Mp, Kp) != (M, K):
        a = jnp.zeros((Mp, Kp), in_dt).at[:M, :K].set(a)
    if (Kp, Np) != (K, N):
        b = jnp.zeros((Kp, Np), in_dt).at[:K, :N].set(b)

    cost = pl.CostEstimate(
        flops=2 * Mp * Np * Kp,
        transcendentals=0,
        bytes_accessed=(Mp * Kp + Kp * Np) * a.dtype.itemsize + Mp * Np * 4)

    out = pl.pallas_call(
        _matmul_kernel,
        out_shape=jax.ShapeDtypeStruct((Mp, Np), jnp.float32),
        grid=(Mp // TM, Np // TN, Kp // TK),
        in_specs=[pl.BlockSpec((TM, TK), lambda i, j, k: (i, k)),
                  pl.BlockSpec((TK, TN), lambda i, j, k: (k, j))],
        out_specs=pl.BlockSpec((TM, TN), lambda i, j, k: (i, j)),
        compiler_params=pltpu.CompilerParams(
            dimension_semantics=("parallel", "parallel", "arbitrary")),
        cost_estimate=cost,
    )(a, b)
    if (Mp, Np) != (M, N):
        out = out[:M, :N]
    return out


# --------------------- Fused conv epilogue (residual+ELU) ----------------

def _conv_out_kernel(agg_ref, res_ref, o_ref, *, final):
    y = agg_ref[...] + res_ref[...]
    # ELU(alpha=1); expm1(min(y,0)) avoids overflow in the unselected branch.
    y = jnp.where(y > 0, y, jnp.expm1(jnp.minimum(y, 0.0)))
    if final:
        # F.normalize(y, dim=1); padded lanes are zero so the norm is exact.
        norm = jnp.sqrt(jnp.sum(y * y, axis=1, keepdims=True))
        y = y / jnp.maximum(norm, 1e-12)
    o_ref[...] = y


def conv_out_pallas(agg, res, final):
    N, D = agg.shape
    Dp = _round_up(D, 128)
    TR = min(512, _round_up(N, 8))
    Np_ = _round_up(N, TR)
    agg_p = agg.astype(jnp.float32)
    res_p = res.astype(jnp.float32)
    if (Np_, Dp) != (N, D):
        agg_p = jnp.zeros((Np_, Dp), jnp.float32).at[:N, :D].set(agg_p)
        res_p = jnp.zeros((Np_, Dp), jnp.float32).at[:N, :D].set(res_p)
    out = pl.pallas_call(
        functools.partial(_conv_out_kernel, final=final),
        out_shape=jax.ShapeDtypeStruct((Np_, Dp), jnp.float32),
        grid=(Np_ // TR,),
        in_specs=[pl.BlockSpec((TR, Dp), lambda i: (i, 0)),
                  pl.BlockSpec((TR, Dp), lambda i: (i, 0))],
        out_specs=pl.BlockSpec((TR, Dp), lambda i: (i, 0)),
        compiler_params=pltpu.CompilerParams(
            dimension_semantics=("parallel",)),
    )(agg_p, res_p)
    return out[:N, :D]


# ------------------ Fused MLP head (pool + act + out) --------------------

def _head_kernel(x_ref, wp_ref, bp_ref, wo_ref, bo_ref, o_ref, *, act):
    h = jnp.dot(x_ref[...], wp_ref[...],
                preferred_element_type=jnp.float32) + bp_ref[...]
    if act == "relu":
        h = jnp.maximum(h, 0.0)
    elif act == "leakyrelu":
        h = jnp.where(h > 0, h, 0.01 * h)  # nn.LeakyReLU default slope
    else:  # elu
        h = jnp.where(h > 0, h, jnp.expm1(jnp.minimum(h, 0.0)))
    o_ref[...] = jnp.dot(h.astype(wo_ref.dtype), wo_ref[...],
                         preferred_element_type=jnp.float32) + bo_ref[...]


def mlp_head_pallas(x, wp, bp, wo, bo, act):
    N, H = x.shape
    _, O = wo.shape
    Hp, Op = _round_up(H, 128), _round_up(O, 128)
    TR = min(512, _round_up(N, 16))        # bf16 activations -> 16-row sublanes
    Np_ = _round_up(N, TR)
    x_p = x.astype(jnp.bfloat16)
    if (Np_, Hp) != (N, H):
        x_p = jnp.zeros((Np_, Hp), jnp.bfloat16).at[:N, :H].set(x_p)
    wp_p = jnp.zeros((Hp, Hp), jnp.bfloat16).at[:H, :H].set(wp.astype(jnp.bfloat16))
    bp_p = jnp.zeros((1, Hp), jnp.float32).at[0, :H].set(bp)
    wo_p = jnp.zeros((Hp, Op), jnp.bfloat16).at[:H, :O].set(wo.astype(jnp.bfloat16))
    bo_p = jnp.zeros((1, Op), jnp.float32).at[0, :O].set(bo)

    cost = pl.CostEstimate(
        flops=2 * Np_ * Hp * (Hp + Op),
        transcendentals=Np_ * Hp if act == "elu" else 0,
        bytes_accessed=(Np_ * Hp + Hp * Hp + Hp * Op) * 2 + Np_ * Op * 4)

    out = pl.pallas_call(
        functools.partial(_head_kernel, act=act),
        out_shape=jax.ShapeDtypeStruct((Np_, Op), jnp.float32),
        grid=(Np_ // TR,),
        in_specs=[pl.BlockSpec((TR, Hp), lambda i: (i, 0)),
                  pl.BlockSpec((Hp, Hp), lambda i: (0, 0)),
                  pl.BlockSpec((1, Hp), lambda i: (0, 0)),
                  pl.BlockSpec((Hp, Op), lambda i: (0, 0)),
                  pl.BlockSpec((1, Op), lambda i: (0, 0))],
        out_specs=pl.BlockSpec((TR, Op), lambda i: (i, 0)),
        compiler_params=pltpu.CompilerParams(
            dimension_semantics=("parallel",)),
        cost_estimate=cost,
    )(x_p, wp_p, bp_p, wo_p, bo_p)
    return out[:N, :O]


# ------------------------------ SimpleHGN ---------------------------------

def simple_hgn_conv(p, x, src, dst, edge_type, pre_alpha, beta, final, n_nodes):
    """One SimpleHGNConv layer (TwiBot-22 baseline semantics)."""
    D = p["W"].shape[1]

    # ---- parameter preprocessing (tiny, data-independent; plain JAX) ----
    a_dst = p["a"][:D]            # [D, 1]  (x_i side = destination node)
    a_src = p["a"][D:2 * D]       # [D, 1]  (x_j side = source node)
    a_rel = p["a"][2 * D:]        # [D, 1]
    # Fold per-node attention scores into the projection:
    #   (x @ W) @ a_dst == x @ (W @ a_dst)   (same for src)
    w_fused = jnp.concatenate(
        [p["W"], p["W_res"], p["W"] @ a_dst, p["W"] @ a_src], axis=1)  # [d_in, 2D+2]
    r_score = (p["rel_emb"] @ (p["W_r"] @ a_rel))[:, 0]                # [n_rel]

    # ---- single fused node projection on the MXU (x read from HBM once) ----
    proj = pallas_matmul(x, w_fused)          # [N, 2D+2] f32
    xW = proj[:, :D]                          # W x   (messages)
    x_res = proj[:, D:2 * D]                  # W_res x (residual)
    s_dst = proj[:, 2 * D]                    # a_dst . (W x)
    s_src = proj[:, 2 * D + 1]                # a_src . (W x)

    # ---- per-edge attention: gathers + segment softmax (E-sized glue) ----
    logit = s_dst[dst] + s_src[src] + r_score[edge_type]        # [E]
    logit = jnp.where(logit > 0, logit, 0.2 * logit)            # LeakyReLU(0.2)
    m = jax.ops.segment_max(logit, dst, num_segments=n_nodes)   # per-dst max
    e = jnp.exp(logit - m[dst])
    denom = jax.ops.segment_sum(e, dst, num_segments=n_nodes)
    alpha = e / denom[dst]                                      # segment softmax

    if (pre_alpha is not None) and (beta is not None):
        alpha = alpha * (1.0 - beta) + pre_alpha * beta

    # ---- message aggregation: O(E*D) scatter-add (no dense [N,E] one-hot) ----
    # TODO(synk): for very large E, replace segment_sum with a Pallas
    # scalar-prefetch kernel over dst-sorted edges accumulating resident rows.
    msg = xW[src] * alpha[:, None]                              # [E, D]
    agg = jax.ops.segment_sum(msg, dst, num_segments=n_nodes)   # [N, D]

    out = conv_out_pallas(agg, x_res, final)   # fused +residual, ELU, (L2 norm)
    return out, alpha


def simple_hgn_forward(params, x, edge_index, edge_type, config):
    src, dst = edge_index[0], edge_index[1]
    n_nodes = x.shape[0]
    beta = config["SimpleHGN_att_res"]
    n_layers = config["n_layers"]

    h = x.astype(jnp.float32)
    pre_alpha = None
    for i in range(n_layers):
        final = (i == n_layers - 1)
        h, pre_alpha = simple_hgn_conv(
            params["convs"][i], h, src, dst, edge_type,
            pre_alpha if i > 0 else None, beta, final, n_nodes)
        # nn.Dropout -> identity in eval/inference mode.

    return mlp_head_pallas(
        h,
        params["linear_pool"]["w"], params["linear_pool"]["b"],
        params["linear_out"]["w"], params["linear_out"]["b"],
        config["activation"].lower())


# --------------------------- parameter init --------------------------------

def init_params(key, config, in_dim=768, rel_dim=32):
    hd = config["hidden_dim"]
    nl = config["n_layers"]
    nr = config["n_relations"]

    def nrm(k, shape, scale=0.1):
        return scale * jax.random.normal(k, shape, jnp.float32)

    keys = iter(jax.random.split(key, 5 * nl + 4))
    params = {"convs": []}
    for i in range(nl):
        d_in = in_dim if i == 0 else hd
        params["convs"].append({
            "W":       nrm(next(keys), (d_in, hd)),
            "W_r":     nrm(next(keys), (rel_dim, hd)),
            "a":       nrm(next(keys), (3 * hd, 1)),
            "W_res":   nrm(next(keys), (d_in, hd)),
            "rel_emb": nrm(next(keys), (nr, rel_dim)),
        })
    params["linear_pool"] = {"w": nrm(next(keys), (hd, hd)),
                             "b": nrm(next(keys), (hd,))}
    params["linear_out"] = {"w": nrm(next(keys), (hd, 2)),
                            "b": nrm(next(keys), (2,))}
    return params


# ------------------------------- main --------------------------------------

if __name__ == "__main__":
    model_config = dict(
        hidden_dim=32,
        n_layers=2,
        att_heads=2,             # stored by the module but unused in forward
        SimpleHGN_att_res=0.05,  # beta
        n_relations=3,
        dropout=0.3,             # identity at inference
        activation="relu",
    )

    key = jax.random.PRNGKey(0)
    kp, kx, ke, kt = jax.random.split(key, 4)

    N_NODES, N_EDGES, IN_DIM = 12, 24, 768
    params = init_params(kp, model_config, in_dim=IN_DIM)
    x = jax.random.normal(kx, (N_NODES, IN_DIM), jnp.float32)
    edge_index = jax.random.randint(ke, (2, N_EDGES), 0, N_NODES,
                                    dtype=jnp.int32)
    edge_type = jax.random.randint(kt, (N_EDGES,), 0,
                                   model_config["n_relations"],
                                   dtype=jnp.int32)

    out = simple_hgn_forward(params, x, edge_index, edge_type, model_config)
    out = jax.block_until_ready(out)
    assert out.shape == (N_NODES, 2) and out.dtype == jnp.float32
    print("KERNEL_OK")
</pallas_src>

<mosaic_0001>
module attributes {stable_mosaic.version = 11 : i64} {
  func.func @_matmul_kernel(%arg0: i32, %arg1: i32, %arg2: i32, %arg3: memref<16x256xbf16, #tpu.memory_space<vmem>>, %arg4: memref<256x128xbf16, #tpu.memory_space<vmem>>, %arg5: memref<16x128xf32, #tpu.memory_space<vmem>>) attributes {dimension_semantics = [#tpu.dimension_semantics<parallel>, #tpu.dimension_semantics<parallel>, #tpu.dimension_semantics<arbitrary>], iteration_bounds = array<i64: 1, 1, 3>, scalar_prefetch = 0 : i64, scratch_operands = 0 : i64, tpu.core_type = #tpu.core_type<tc>, window_params = [{transform_indices = @transform_0, window_bounds = array<i64: 16, 256>}, {transform_indices = @transform_1, window_bounds = array<i64: 256, 128>}, {transform_indices = @transform_2, window_bounds = array<i64: 16, 128>}]} {
    %c0_i32 = arith.constant 0 : i32
    %0 = arith.cmpi eq, %arg2, %c0_i32 : i32
    %1 = arith.extui %0 : i1 to i32
    %c0_i32_0 = arith.constant 0 : i32
    %2 = arith.cmpi ne, %1, %c0_i32_0 : i32
    scf.if %2 {
      %cst_8 = arith.constant 0.000000e+00 : f32
      %9 = vector.broadcast %cst_8 : f32 to vector<16x128xf32>
      %c0_9 = arith.constant 0 : index
      %c0_10 = arith.constant 0 : index
      %10 = vector.load %arg5[%c0_9, %c0_10] : memref<16x128xf32, #tpu.memory_space<vmem>>, vector<16x128xf32>
      tpu.vector_store %arg5[%c0_9, %c0_10], %9 {strides = array<i32>} : memref<16x128xf32, #tpu.memory_space<vmem>>, vector<16x128xf32>,
    } else {
    }
    %c0 = arith.constant 0 : index
    %c0_1 = arith.constant 0 : index
    %3 = vector.load %arg5[%c0, %c0_1] : memref<16x128xf32, #tpu.memory_space<vmem>>, vector<16x128xf32>
    %c0_2 = arith.constant 0 : index
    %c0_3 = arith.constant 0 : index
    %4 = vector.load %arg3[%c0_2, %c0_3] : memref<16x256xbf16, #tpu.memory_space<vmem>>, vector<16x256xbf16>
    %c0_4 = arith.constant 0 : index
    %c0_5 = arith.constant 0 : index
    %5 = vector.load %arg4[%c0_4, %c0_5] : memref<256x128xbf16, #tpu.memory_space<vmem>>, vector<256x128xbf16>
    %cst = arith.constant dense<0.000000e+00> : vector<16x128xf32>
    %6 = tpu.matmul %4, %5, %cst {dimension_numbers = #tpu.dot_dimension_numbers<[1], [0], [0], [1], [0, 0, 1, 1], [], []>} : vector<16x256xbf16>, vector<256x128xbf16>, vector<16x128xf32> -> vector<16x128xf32>
    %7 = arith.addf %3, %6 : vector<16x128xf32>
    %c0_6 = arith.constant 0 : index
    %c0_7 = arith.constant 0 : index
    %8 = vector.load %arg5[%c0_6, %c0_7] : memref<16x128xf32, #tpu.memory_space<vmem>>, vector<16x128xf32>
    tpu.vector_store %arg5[%c0_6, %c0_7], %7 {strides = array<i32>} : memref<16x128xf32, #tpu.memory_space<vmem>>, vector<16x128xf32>,
    return
  }
  func.func @transform_0(%arg0: i32, %arg1: i32, %arg2: i32) -> (i32, i32) {
    %c0_i32 = arith.constant 0 : i32
    return %arg0, %arg2 : i32, i32
  }
  func.func @transform_1(%arg0: i32, %arg1: i32, %arg2: i32) -> (i32, i32) {
    %c0_i32 = arith.constant 0 : i32
    return %arg2, %arg1 : i32, i32
  }
  func.func @transform_2(%arg0: i32, %arg1: i32, %arg2: i32) -> (i32, i32) {
    %c0_i32 = arith.constant 0 : i32
    return %arg0, %arg1 : i32, i32
  }
}

</mosaic_0001>

<llo_original>
// kernel: tpu_custom_call.1
$region0: #{tpu_custom_call.1}
  #allocation0 [shape = 'u32[]', space=smem, size = 0x4, offset = 0x4, fixed_abs, tag = 'smem constant byte address 0x4 - core index']
  #allocation1 [shape = 'u32[144,128]{1,0:T(1,128)}', space=vmem, size = 0x12000, scoped, tag = 'internal scratch']
  %s0 = inlined_call_operand.hbm [shape: bf16[16,768], index: 0, kind: input, shape index: {}]
  %s1 = inlined_call_operand.hbm [shape: bf16[768,128], index: 1, kind: input, shape index: {}]
  %s2 = inlined_call_operand.hbm [shape: f32[16,128], index: 2, kind: output, shape index: {}]
  %s3 = sld [smem:[#allocation0]]
  $region53: #{tpu_custom_call.1} parent=0
    _
  %s5 = ssub.s32 1, %s3
  %s6 = scalar_select 0, %s5, %s3
  $region1: #{tpu_custom_call.1} parent=0
    #allocation2 [shape = 'u8[16384]{0}', space=vmem, size = 0x4000, scoped, tag = 'input window, operand 0']
    #allocation3 [shape = 's32[2]{0}', space=sflag, size = 0x8, scoped, tag = 'scoped memory for tpu_custom_call.1']
    #allocation4 [shape = 's32[2]{0}', space=sflag, size = 0x8, scoped, tag = 'scoped memory for tpu_custom_call.1']
    #allocation5 [shape = 'u8[131072]{0}', space=vmem, size = 0x20000, scoped, tag = 'input window, operand 1']
    #allocation6 [shape = 's32[2]{0}', space=sflag, size = 0x8, scoped, tag = 'scoped memory for tpu_custom_call.1']
    #allocation7 [shape = 'u8[8192]{0}', space=vmem, size = 0x2000, scoped, tag = 'output window, operand 0, single buffered']
    %7 = vsyncpa [#allocation3], 0
    %s8 = scalar_lea.sflag [#allocation3], 1
    %9 = vsyncpa %s8, 0
    %10 = vsyncpa [#allocation6], 0
    %s11 = scalar_lea.sflag [#allocation6], 1
    %12 = vsyncpa %s11, 0
    %13 = vsyncpa [#allocation4], 0
    loop: start=0, step=1, limit=5
    $region2: #{tpu_custom_call.1} parent=1 // loop_pre_header
      _
    $region3: #{tpu_custom_call.1} parent=1 // loop_header
      %s15 = sphi 0, %s19
      %p16 = scmp.ge.s32.totalorder %s15, 5
      %s22 = sphi 0, %s41
      %s23 = sphi 0, %s37
      %s24 = sphi 0, %s33
      %s25 = sphi 0, %s22
      %s26 = sphi 0, %s23
      %s27 = sphi 0, %s24
      %s28 = sphi 0, %s25
      %s29 = sphi 0, %s26
      %s30 = sphi 0, %s27
      %s46 = sphi 0, %s48
      %s49 = sphi 0, %s46
      %s50 = sphi 0, %s49
      %s66 = sphi 0, %s50
      %s74 = sphi 0, %s76
      %s77 = sphi 0, %s74
      %s78 = sphi 0, %s77
      %s94 = sphi 0, %s78
      %s102 = sphi 0, %s104
      %s105 = sphi 0, %s102
      %s106 = sphi 0, %s105
      %s122 = sphi 0, %s106
    $region4: #{tpu_custom_call.1} parent=1 // loop_header_branch
      %18 = sbr.rel (%p16) target = $region8
    $region5: #{tpu_custom_call.1} parent=1 // loop_body
      %s20 = ssub.s32 %s15, 1
      %s21 = ssub.s32 %s15, 2
      %s31 = sadd.s32 1, %s24
      %p32 = scmp.ge.s32.totalorder %s31, 3
      %s33 = scalar_select %p32, 0, %s31
      %s34 = sadd.s32 1, %s23
      %s35 = scalar_select %p32, %s34, %s23
      %p36 = scmp.ge.s32.totalorder %s35, 1
      %s37 = scalar_select %p36, 0, %s35
      %s38 = sadd.s32 1, %s22
      %s39 = scalar_select %p36, %s38, %s22
      %p40 = scmp.ge.s32.totalorder %s39, 1
      %s41 = scalar_select %p40, 0, %s39
      %s42 = ssub.s32 %s22, %s41
      %s43 = ssub.s32 %s24, %s33
      %s44 = sor.u32 %s42, %s43
      %p45 = scmp.eq.s32.totalorder %s44, 0
      %s47 = sadd.s32 %s46, 1
      %s48 = scalar_select %p45, %s46, %s47
      %p51 = pneg %p45
      %p52 = scmp.eq.s32.totalorder %s15, 2
      %p53 = por %p51, %p52
      %p54 = scmp.ne.s32.totalorder %s46, %s49
      %p55 = scmp.eq.s32.totalorder %s15, 0
      %p56 = por %p54, %p55
      %p57 = scmp.ne.s32.totalorder %s46, %s49
      %p58 = scmp.eq.s32.totalorder %s20, 2
      %p59 = por %p57, %p58
      %p60 = scmp.ne.s32.totalorder %s49, %s50
      %p61 = scmp.eq.s32.totalorder %s20, 0
      %p62 = por %p60, %p61
      %p63 = scmp.ne.s32.totalorder %s49, %s50
      %p64 = scmp.eq.s32.totalorder %s21, 2
      %p65 = por %p63, %p64
      %p67 = scmp.ne.s32.totalorder %s50, %s66
      %p68 = scmp.eq.s32.totalorder %s21, 0
      %p69 = por %p67, %p68
      %s70 = ssub.s32 %s24, %s33
      %s71 = ssub.s32 %s23, %s37
      %s72 = sor.u32 %s70, %s71
      %p73 = scmp.eq.s32.totalorder %s72, 0
      %s75 = sadd.s32 %s74, 1
      %s76 = scalar_select %p73, %s74, %s75
      %p79 = pneg %p73
      %p80 = scmp.eq.s32.totalorder %s15, 2
      %p81 = por %p79, %p80
      %p82 = scmp.ne.s32.totalorder %s74, %s77
      %p83 = scmp.eq.s32.totalorder %s15, 0
      %p84 = por %p82, %p83
      %p85 = scmp.ne.s32.totalorder %s74, %s77
      %p86 = scmp.eq.s32.totalorder %s20, 2
      %p87 = por %p85, %p86
      %p88 = scmp.ne.s32.totalorder %s77, %s78
      %p89 = scmp.eq.s32.totalorder %s20, 0
      %p90 = por %p88, %p89
      %p91 = scmp.ne.s32.totalorder %s77, %s78
      %p92 = scmp.eq.s32.totalorder %s21, 2
      %p93 = por %p91, %p92
      %p95 = scmp.ne.s32.totalorder %s78, %s94
      %p96 = scmp.eq.s32.totalorder %s21, 0
      %p97 = por %p95, %p96
      %s98 = ssub.s32 %s22, %s41
      %s99 = ssub.s32 %s23, %s37
      %s100 = sor.u32 %s98, %s99
      %p101 = scmp.eq.s32.totalorder %s100, 0
      %s103 = sadd.s32 %s102, 1
      %s104 = scalar_select %p101, %s102, %s103
      %p107 = pneg %p101
      %p108 = scmp.eq.s32.totalorder %s15, 2
      %p109 = por %p107, %p108
      %p110 = scmp.ne.s32.totalorder %s102, %s105
      %p111 = scmp.eq.s32.totalorder %s15, 0
      %p112 = por %p110, %p111
      %p113 = scmp.ne.s32.totalorder %s102, %s105
      %p114 = scmp.eq.s32.totalorder %s20, 2
      %p115 = por %p113, %p114
      %p116 = scmp.ne.s32.totalorder %s105, %s106
      %p117 = scmp.eq.s32.totalorder %s20, 0
      %p118 = por %p116, %p117
      %p119 = scmp.ne.s32.totalorder %s105, %s106
      %p120 = scmp.eq.s32.totalorder %s21, 2
      %p121 = por %p119, %p120
      %p123 = scmp.ne.s32.totalorder %s106, %s122
      %p124 = scmp.eq.s32.totalorder %s21, 0
      %p125 = por %p123, %p124
      %p126 = scmp.le.s32.totalorder 1, %s15
      %p127 = scmp.lt.s32.totalorder %s15, 4
      %p128 = pnand %p126, %p127
      %p129 = pneg %p128
      // Predicated region
      $region9: #{tpu_custom_call.1} parent=5 // pred_check
        _
      $region10: #{tpu_custom_call.1} parent=5 // pred_check_branch
        %131 = sbr.rel (%p128) target = $region12
      $region11: #{tpu_custom_call.1} parent=5 // pred_region
        %s132 = ssub.s32 %s15, 1
      $region12: #{tpu_custom_call.1} parent=5 // pred_fallthru
        _
      %p133 = scmp.lt.s32.totalorder %s15, 3
      // Predicated region
      $region13: #{tpu_custom_call.1} parent=5 // pred_check
        %p134 = pneg %p133
      $region14: #{tpu_custom_call.1} parent=5 // pred_check_branch
        %136 = sbr.rel (%p134) target = $region16
      $region15: #{tpu_custom_call.1} parent=5 // pred_region
        // Predicated region
        $region17: #{tpu_custom_call.1} parent=15 // pred_check
          %p137 = pneg %p56
        $region18: #{tpu_custom_call.1} parent=15 // pred_check_branch
          %139 = sbr.rel (%p137) target = $region20
        $region19: #{tpu_custom_call.1} parent=15 // pred_region
          %s140 = sand.u32 %s46, 1
          %s141 = scalar_lea.sflag [#allocation3], %s140
          %s142 = sand.u32 %s46, 1
          %s143 = smul.addr %s142, 16
          %s144 = scalar_lea.vmem [#allocation2], %s143
          %s145 = smul.u32 2, %s22
          %s146 = smul.u32 2, %s24
          %s148 = ssub.s32 256, 256
          %149 = vsyncadd %s141, %s148
          %s150 = smul.addr %s145, 6
          %s151 = sadd.s32 %s146, %s150
          %s152 = smul.addr %s151, 64
          %s153 = scalar_lea.hbm %s0, %s152
          %s154 = sshll.u32 %s144, 4
          %s155 = int_to_ptr.vmem [resolvable:$true] %s154
          %160 = dma.hbm_to_vmem [thread:$0]  %s153, 256, %s155, %s141, 384, 128, 8
        $region20: #{tpu_custom_call.1} parent=15 // pred_fallthru
          _
        // Predicated region
        $region21: #{tpu_custom_call.1} parent=15 // pred_check
          %p161 = pneg %p84
        $region22: #{tpu_custom_call.1} parent=15 // pred_check_branch
          %163 = sbr.rel (%p161) target = $region24
        $region23: #{tpu_custom_call.1} parent=15 // pred_region
          %s164 = sand.u32 %s74, 1
          %s165 = scalar_lea.sflag [#allocation6], %s164
          %s166 = sand.u32 %s74, 1
          %s167 = smul.addr %s166, 128
          %s168 = scalar_lea.vmem [#allocation5], %s167
          %s169 = smul.u32 32, %s24
          %s171 = ssub.s32 2048, 2048
          %172 = vsyncadd %s165, %s171
          %s173 = sadd.s32 %s23, %s169
          %s174 = smul.addr %s173, 64
          %s175 = scalar_lea.hbm %s1, %s174
          %s176 = sshll.u32 %s168, 4
          %s177 = int_to_ptr.vmem [resolvable:$true] %s176
          %182 = dma.hbm_to_vmem [thread:$0]  %s175, 2048, %s177, %s165, 64, 64, 4
        $region24: #{tpu_custom_call.1} parent=15 // pred_fallthru
          _
      $region16: #{tpu_custom_call.1} parent=5 // pred_fallthru
        _
      %p183 = scmp.le.s32.totalorder 1, %s15
      %p184 = scmp.lt.s32.totalorder %s15, 4
      %p185 = pnand %p183, %p184
      %p186 = pneg %p185
      // Predicated region
      $region25: #{tpu_custom_call.1} parent=5 // pred_check
        _
      $region26: #{tpu_custom_call.1} parent=5 // pred_check_branch
        %188 = sbr.rel (%p185) target = $region28
      $region27: #{tpu_custom_call.1} parent=5 // pred_region
        %s189 = ssub.s32 %s15, 1
        %s190 = sand.u32 %s49, 1
        %s191 = scalar_lea.sflag [#allocation3], %s190
        %s192 = sand.u32 %s49, 1
        %s193 = smul.addr %s192, 16
        %s194 = scalar_lea.vmem [#allocation2], %s193
        // Predicated region
        $region29: #{tpu_custom_call.1} parent=27 // pred_check
          %p195 = pneg %p62
        $region30: #{tpu_custom_call.1} parent=27 // pred_check_branch
          %197 = sbr.rel (%p195) target = $region32
        $region31: #{tpu_custom_call.1} parent=27 // pred_region
          %198 = dma.done %s191, 256
        $region32: #{tpu_custom_call.1} parent=27 // pred_fallthru
          _
        %s199 = sand.u32 %s77, 1
        %s200 = scalar_lea.sflag [#allocation6], %s199
        %s201 = sand.u32 %s77, 1
        %s202 = smul.addr %s201, 128
        %s203 = scalar_lea.vmem [#allocation5], %s202
        // Predicated region
        $region33: #{tpu_custom_call.1} parent=27 // pred_check
          %p204 = pneg %p90
        $region34: #{tpu_custom_call.1} parent=27 // pred_check_branch
          %206 = sbr.rel (%p204) target = $region36
        $region35: #{tpu_custom_call.1} parent=27 // pred_region
          %207 = dma.done %s200, 2048
        $region36: #{tpu_custom_call.1} parent=27 // pred_fallthru
          _
        %s208 = sand.u32 %s49, 1
        %s209 = scalar_lea.sflag [#allocation3], %s208
        %s210 = sand.u32 %s49, 1
        %s211 = smul.addr %s210, 16
        %s212 = scalar_lea.vmem [#allocation2], %s211
        %p213 = pneg %p62
        %p214 = pneg %p59
        %s215 = sand.u32 %s77, 1
        %s216 = scalar_lea.sflag [#allocation6], %s215
        %s217 = sand.u32 %s77, 1
        %s218 = smul.addr %s217, 128
        %s219 = scalar_lea.vmem [#allocation5], %s218
        %p220 = pneg %p90
        %p221 = pneg %p87
        %p222 = pneg %p118
        %p223 = pneg %p115
        %s224 = smul.u32 2, %s25
        %s225 = smul.u32 2, %s27
        %s226 = smul.u32 32, %s27
        %s227 = smul.u32 2, %s25
        %p229 = scmp.eq.s32.totalorder %s27, 0
        // Predicated region
        $region37: #{tpu_custom_call.1} parent=27 // pred_check
          %p230 = pneg %p229
        $region38: #{tpu_custom_call.1} parent=27 // pred_check_branch
          %232 = sbr.rel (%p230) target = $region40
        $region39: #{tpu_custom_call.1} parent=27 // pred_region
          %233 = vst [vmem:[#allocation7] sm:$0xff] 0.0
          %234 = vst [vmem:[#allocation7 + $0x8] sm:$0xff] 0.0
        $region40: #{tpu_custom_call.1} parent=27 // pred_fallthru
          _
        %v235 = vld [vmem:[#allocation7] sm:$0xff]
        %v236 = vld [vmem:[#allocation7 + $0x8] sm:$0xff]
        %v237 = vld [vmem:[%s194] sm:$0xff]
        %v238 = vld [vmem:[%s194 + $0x8] sm:$0xff]
        %v239 = vld [vmem:[%s203] sm:$0xf]
        %v240 = vld [vmem:[%s203 + $0x4] sm:$0xf]
        %v241 = vld [vmem:[%s203 + $0x8] sm:$0xf]
        %v242 = vld [vmem:[%s203 + $0xc] sm:$0xf]
        %v243 = vld [vmem:[%s203 + $0x10] sm:$0xf]
        %v244 = vld [vmem:[%s203 + $0x14] sm:$0xf]
        %v245 = vld [vmem:[%s203 + $0x18] sm:$0xf]
        %v246 = vld [vmem:[%s203 + $0x1c] sm:$0xf]
        %v247 = vld [vmem:[%s203 + $0x20] sm:$0xf]
        %v248 = vld [vmem:[%s203 + $0x24] sm:$0xf]
        %v249 = vld [vmem:[%s203 + $0x28] sm:$0xf]
        %v250 = vld [vmem:[%s203 + $0x2c] sm:$0xf]
        %v251 = vld [vmem:[%s203 + $0x30] sm:$0xf]
        %v252 = vld [vmem:[%s203 + $0x34] sm:$0xf]
        %v253 = vld [vmem:[%s203 + $0x38] sm:$0xf]
        %v254 = vld [vmem:[%s203 + $0x3c] sm:$0xf]
        %v255 = vld [vmem:[%s203 + $0x40] sm:$0xf]
        %v256 = vld [vmem:[%s203 + $0x44] sm:$0xf]
        %v257 = vld [vmem:[%s203 + $0x48] sm:$0xf]
        %v258 = vld [vmem:[%s203 + $0x4c] sm:$0xf]
        %v259 = vld [vmem:[%s203 + $0x50] sm:$0xf]
        %v260 = vld [vmem:[%s203 + $0x54] sm:$0xf]
        %v261 = vld [vmem:[%s203 + $0x58] sm:$0xf]
        %v262 = vld [vmem:[%s203 + $0x5c] sm:$0xf]
        %v263 = vld [vmem:[%s203 + $0x60] sm:$0xf]
        %v264 = vld [vmem:[%s203 + $0x64] sm:$0xf]
        %v265 = vld [vmem:[%s203 + $0x68] sm:$0xf]
        %v266 = vld [vmem:[%s203 + $0x6c] sm:$0xf]
        %v267 = vld [vmem:[%s203 + $0x70] sm:$0xf]
        %v268 = vld [vmem:[%s203 + $0x74] sm:$0xf]
        %v269 = vld [vmem:[%s203 + $0x78] sm:$0xf]
        %v270 = vld [vmem:[%s203 + $0x7c] sm:$0xf]
        %v273 = vunpack.c.l.b16 %v237
        %v274 = vunpack.c.h.b16 %v237
        %v275 = vunpack.c.l.b16 %v238
        %v276 = vunpack.c.h.b16 %v238
        %v277 = vpack.c.b16 %v275, %v273
        %v278 = vpack.c.b16 %v276, %v274
        %v313 = vunpack.c.l.b16 %v239
        %v314 = vunpack.c.l.b16 %v240
        %v315 = vunpack.c.l.b16 %v241
        %v316 = vunpack.c.l.b16 %v242
        %v317 = vunpack.c.l.b16 %v243
        %v318 = vunpack.c.l.b16 %v244
        %v319 = vunpack.c.l.b16 %v245
        %v320 = vunpack.c.l.b16 %v246
        %v321 = vunpack.c.l.b16 %v247
        %v322 = vunpack.c.l.b16 %v248
        %v323 = vunpack.c.l.b16 %v249
        %v324 = vunpack.c.l.b16 %v250
        %v325 = vunpack.c.l.b16 %v251
        %v326 = vunpack.c.l.b16 %v252
        %v327 = vunpack.c.l.b16 %v253
        %v328 = vunpack.c.l.b16 %v254
        %v329 = vunpack.c.l.b16 %v255
        %v330 = vunpack.c.l.b16 %v256
        %v331 = vunpack.c.l.b16 %v257
        %v332 = vunpack.c.l.b16 %v258
        %v333 = vunpack.c.l.b16 %v259
        %v334 = vunpack.c.l.b16 %v260
        %v335 = vunpack.c.l.b16 %v261
        %v336 = vunpack.c.l.b16 %v262
        %v337 = vunpack.c.l.b16 %v263
        %v338 = vunpack.c.l.b16 %v264
        %v339 = vunpack.c.l.b16 %v265
        %v340 = vunpack.c.l.b16 %v266
        %v341 = vunpack.c.l.b16 %v267
        %v342 = vunpack.c.l.b16 %v268
        %v343 = vunpack.c.l.b16 %v269
        %v344 = vunpack.c.l.b16 %v270
        %v345 = vpack.c.b16 %v314, %v313
        %v346 = vpack.c.b16 %v316, %v315
        %v347 = vpack.c.b16 %v318, %v317
        %v348 = vpack.c.b16 %v320, %v319
        %v349 = vpack.c.b16 %v322, %v321
        %v350 = vpack.c.b16 %v324, %v323
        %v351 = vpack.c.b16 %v326, %v325
        %v352 = vpack.c.b16 %v328, %v327
        %v353 = vpack.c.b16 %v330, %v329
        %v354 = vpack.c.b16 %v332, %v331
        %v355 = vpack.c.b16 %v334, %v333
        %v356 = vpack.c.b16 %v336, %v335
        %v357 = vpack.c.b16 %v338, %v337
        %v358 = vpack.c.b16 %v340, %v339
        %v359 = vpack.c.b16 %v342, %v341
        %v360 = vpack.c.b16 %v344, %v343
        %377 = vmatprep.subr.bf16.mxu0 0
        %378 = vmatpush1.bf16.msra.mxu0 %v345
        %379 = vmatprep.subr.bf16.mxu0 0
        %380 = vmatpush1.bf16.msra.mxu0 %v346
        %381 = vmatprep.subr.bf16.mxu0 0
        %382 = vmatpush1.bf16.msra.mxu0 %v347
        %383 = vmatprep.subr.bf16.mxu0 0
        %384 = vmatpush1.bf16.msra.mxu0 %v348
        %385 = vmatprep.subr.bf16.mxu0 0
        %386 = vmatpush1.bf16.msra.mxu0 %v349
        %387 = vmatprep.subr.bf16.mxu0 0
        %388 = vmatpush1.bf16.msra.mxu0 %v350
        %389 = vmatprep.subr.bf16.mxu0 0
        %390 = vmatpush1.bf16.msra.mxu0 %v351
        %391 = vmatprep.subr.bf16.mxu0 0
        %392 = vmatpush1.bf16.msra.mxu0 %v352
        %393 = vmatprep.subr.bf16.mxu0 0
        %394 = vmatpush1.bf16.msra.mxu0 %v353
        %395 = vmatprep.subr.bf16.mxu0 0
        %396 = vmatpush1.bf16.msra.mxu0 %v354
        %397 = vmatprep.subr.bf16.mxu0 0
        %398 = vmatpush1.bf16.msra.mxu0 %v355
        %399 = vmatprep.subr.bf16.mxu0 0
        %400 = vmatpush1.bf16.msra.mxu0 %v356
        %401 = vmatprep.subr.bf16.mxu0 0
        %402 = vmatpush1.bf16.msra.mxu0 %v357
        %403 = vmatprep.subr.bf16.mxu0 0
        %404 = vmatpush1.bf16.msra.mxu0 %v358
        %405 = vmatprep.subr.bf16.mxu0 0
        %406 = vmatpush1.bf16.msra.mxu0 %v359
        %407 = vmatprep.subr.bf16.mxu0 0
        %408 = vmatpush1.bf16.msra.mxu0 %v360
        %409 = vmatprep.mubr.bf16.mxu0 %v278
        %410 = vmatmul.mubr.bf16.gmra.mrb[0].mxu0 %v277
        %v411 = vpop.f32.mrb[0].mxu0
        %v412 = vadd.f32 0.0, %v411
        %v413 = vpop.f32.mrb[0].mxu0
        %v414 = vpop.f32.mrb[0].mxu0
        %v415 = vadd.f32 0.0, %v414
        %v416 = vpop.f32.mrb[0].mxu0
        %417 = vdwg.mxu0
        %v418 = vadd.f32 %v235, %v412
        %v419 = vadd.f32 %v236, %v415
        %420 = vst [vmem:[#allocation7] sm:$0xff] %v418
        %421 = vst [vmem:[#allocation7 + $0x8] sm:$0xff] %v419
        // Predicated region
        $region41: #{tpu_custom_call.1} parent=27 // pred_check
          %p422 = pneg %p115
        $region42: #{tpu_custom_call.1} parent=27 // pred_check_branch
          %424 = sbr.rel (%p422) target = $region44
        $region43: #{tpu_custom_call.1} parent=27 // pred_region
          %s425 = smul.u32 2, %s25
          %s427 = ssub.s32 256, 256
          %428 = vsyncadd [#allocation4], %s427
          %s429 = sadd.s32 %s26, %s425
          %s430 = smul.addr %s429, 128
          %s431 = scalar_lea.hbm %s2, %s430
          %s432 = sshll.u32 [#allocation7], 4
          %s433 = int_to_ptr.vmem [resolvable:$true] %s432
          %438 = dma.vmem_to_hbm [thread:$0]  %s433, 256, %s431, [#allocation4], 128, 128, 8
        $region44: #{tpu_custom_call.1} parent=27 // pred_fallthru
          _
        // Predicated region
        $region45: #{tpu_custom_call.1} parent=27 // pred_check
          %p439 = pneg %p115
        $region46: #{tpu_custom_call.1} parent=27 // pred_check_branch
          %441 = sbr.rel (%p439) target = $region48
        $region47: #{tpu_custom_call.1} parent=27 // pred_region
          %442 = dma.done [#allocation4], 256
        $region48: #{tpu_custom_call.1} parent=27 // pred_fallthru
          _
      $region28: #{tpu_custom_call.1} parent=5 // pred_fallthru
        _
      %p443 = scmp.le.s32.totalorder 2, %s15
      // Predicated region
      $region49: #{tpu_custom_call.1} parent=5 // pred_check
        %p444 = pneg %p443
      $region50: #{tpu_custom_call.1} parent=5 // pred_check_branch
        %446 = sbr.rel (%p444) target = $region52
      $region51: #{tpu_custom_call.1} parent=5 // pred_region
        %s447 = ssub.s32 %s15, 2
      $region52: #{tpu_custom_call.1} parent=5 // pred_fallthru
        _
    $region6: #{tpu_custom_call.1} parent=1 // loop_footer
      %s19 = sadd.s32 1, %s15
    $region7: #{tpu_custom_call.1} parent=1 // loop_footer_branch
      %14 = sbr.rel target = $region3
    $region8: #{tpu_custom_call.1} parent=1 // loop_exit
      _
    %448 = vsyncpa [#allocation3], 1
    %s449 = scalar_lea.sflag [#allocation3], 1
    %450 = vsyncpa %s449, 1
    %451 = vsyncpa [#allocation6], 1
    %s452 = scalar_lea.sflag [#allocation6], 1
    %453 = vsyncpa %s452, 1
    %454 = vsyncpa [#allocation4], 1
    %s455 = scalar_lea.sflag [#allocation4], 1
    %456 = vsyncpa %s455, 1

</llo_original>
